<compile_context>
chip_gen: v6e
topology: v6e:2x2x1
jax: 0.10.0
libtpu: 0.0.40
codegen_flags: <defaults>
</compile_context>

<pallas_src>
import jax
import jax.numpy as jnp
from jax.experimental import pallas as pl
from jax.experimental.pallas import tpu as pltpu


def _round_up(n, m):
    return ((n + m - 1) // m) * m


def mlp_kernel(xt_ref, w1_ref, b1_ref, w2_ref, b2_ref, ot_ref):
    # All operands live in VMEM. Batch sits on the lane (last, 128-wide) axis.
    xt = xt_ref[...]                                              # (4, TB)
    h = jnp.dot(w1_ref[...], xt,
                preferred_element_type=jnp.float32)               # (H, TB), f32 accumulate
    h = jnp.maximum(h + b1_ref[...], 0.0)                         # bias (H,1) bcast over lanes
    h = h.astype(w2_ref.dtype)                                    # bf16 path: halve 2nd-dot operand
    y = jnp.dot(w2_ref[...], h,
                preferred_element_type=jnp.float32)               # (3, TB)
    y = y + b2_ref[...]                                           # bias (3,1)
    ot_ref[...] = y.astype(ot_ref.dtype)


def _pick_tb(B, H, block_b, itemsize, vmem_budget_bytes):
    """Batch-tile (lane) size: multiple of 128, VMEM-budgeted, >=2 balanced grid steps if possible."""
    # Dominant per-step VMEM, per unit of TB:
    #   double-buffered x^T (4->8 sublanes) and y^T (3->8 sublanes) tiles: 2 * 2 * 8 * itemsize
    #   (H, TB) f32 intermediate h (+1x headroom for relu/bias temporaries): 2 * 4 * H
    per_tb = 2 * 2 * 8 * itemsize + 2 * 4 * H
    vmem_cap = max(128, (vmem_budget_bytes // per_tb) // 128 * 128)

    b_lanes = _round_up(B, 128)                                   # minimum lane-padded batch
    tb = max(128, (min(block_b, vmem_cap, b_lanes) // 128) * 128)
    # Keep at least two grid steps when the batch allows it (v7x dual-TensorCore split).
    if b_lanes >= 2 * 128:
        tb = min(tb, _round_up(pl.cdiv(b_lanes, 2), 128))
    # Balance tiles across steps to minimize padding waste at large batch (never increases tb).
    steps = pl.cdiv(b_lanes, tb)
    tb = _round_up(pl.cdiv(b_lanes, steps), 128)
    return tb


def mlp_forward(x, w1, b1, w2, b2, *, block_b=32768, vmem_budget_bytes=12 * 1024 * 1024):
    """x: (B, 4) -> (B, 3).

    Weights in PyTorch nn.Linear layout: w1 (H, 4), b1 (H, 1), w2 (3, H), b2 (3, 1).
    Internally computes y^T = W2 @ relu(W1 @ x^T + b1) + b2 with batch on the lane axis.
    """
    B = x.shape[0]
    H = w1.shape[0]
    dtype = x.dtype
    itemsize = jnp.dtype(dtype).itemsize

    TB = _pick_tb(B, H, block_b, itemsize, vmem_budget_bytes)
    B_pad = _round_up(B, TB)
    grid = (B_pad // TB,)

    # Wrapper-side layout plumbing (pad + transpose) -> lane-dense (4, B_pad) slab.
    # allow_input_fusion below lets XLA fold this into the pallas_call operand.
    xt = jnp.pad(x, ((0, B_pad - B), (0, 0))).T                   # (4, B_pad)

    bytes_accessed = itemsize * (xt.size + 3 * B_pad) + sum(
        jnp.dtype(a.dtype).itemsize * a.size for a in (w1, b1, w2, b2))
    cost = pl.CostEstimate(flops=2 * B_pad * (4 * H + H * 3),
                           transcendentals=0,
                           bytes_accessed=int(bytes_accessed))

    out_t = pl.pallas_call(
        mlp_kernel,
        out_shape=jax.ShapeDtypeStruct((3, B_pad), dtype),
        grid=grid,
        in_specs=[
            pl.BlockSpec((4, TB), lambda i: (0, i)),   # x^T: tiled over batch (lane axis)
            pl.BlockSpec((H, 4), lambda i: (0, 0)),    # W1: VMEM-resident, loaded once
            pl.BlockSpec((H, 1), lambda i: (0, 0)),    # b1: VMEM-resident
            pl.BlockSpec((3, H), lambda i: (0, 0)),    # W2: VMEM-resident
            pl.BlockSpec((3, 1), lambda i: (0, 0)),    # b2: VMEM-resident
        ],
        out_specs=pl.BlockSpec((3, TB), lambda i: (0, i)),
        compiler_params=pltpu.CompilerParams(
            dimension_semantics=("parallel",),               # shard batch over TCs (v7x)
            vmem_limit_bytes=32 * 1024 * 1024,               # covers v5e's 16 MiB default
            allow_input_fusion=[True, False, False, False, False],  # fuse pad+transpose of x
        ),
        cost_estimate=cost,
    )(xt, w1, b1, w2, b2)

    return out_t[:, :B].T                                      # (B, 3)


def init_params(key, hidden, dtype=jnp.float32):
    # nn.Linear-style U(-1/sqrt(fan_in), 1/sqrt(fan_in)) init, PyTorch (out, in) layout.
    k1, k2, k3, k4 = jax.random.split(key, 4)
    lim1 = 1.0 / jnp.sqrt(4.0)
    lim2 = 1.0 / jnp.sqrt(float(hidden))
    w1 = jax.random.uniform(k1, (hidden, 4), dtype, -lim1, lim1)
    b1 = jax.random.uniform(k2, (hidden, 1), dtype, -lim1, lim1)
    w2 = jax.random.uniform(k3, (3, hidden), dtype, -lim2, lim2)
    b2 = jax.random.uniform(k4, (3, 1), dtype, -lim2, lim2)
    return w1, b1, w2, b2


def _ref(x, w1, b1, w2, b2):
    h = jnp.maximum(x @ w1.T + b1[:, 0], 0.0)
    return h @ w2.T + b2[:, 0]


if __name__ == "__main__":
    key = jax.random.PRNGKey(0)
    kx, kp, kx2 = jax.random.split(key, 3)

    batch, hidden = 8, 32
    w1, b1, w2, b2 = init_params(kp, hidden)

    # Small case (single grid step, padded batch), f32.
    x = jax.random.normal(kx, (batch, 4), jnp.float32)
    out = jax.block_until_ready(mlp_forward(x, w1, b1, w2, b2))
    assert out.shape == (batch, 3)
    assert jnp.allclose(out, _ref(x, w1, b1, w2, b2), atol=1e-5, rtol=1e-5)

    # Non-divisible batch exercising a multi-step grid and the padding/slice path, f32.
    batch2 = 300
    x2 = jax.random.normal(kx2, (batch2, 4), jnp.float32)
    out2 = jax.block_until_ready(mlp_forward(x2, w1, b1, w2, b2, block_b=128))
    assert out2.shape == (batch2, 3)
    assert jnp.allclose(out2, _ref(x2, w1, b1, w2, b2), atol=1e-5, rtol=1e-5)

    # bf16 I/O path (halves HBM traffic on v5e/v6e/v7x); f32 accumulation inside the kernel.
    xb = x2.astype(jnp.bfloat16)
    w1b, b1b, w2b, b2b = (p.astype(jnp.bfloat16) for p in (w1, b1, w2, b2))
    outb = jax.block_until_ready(mlp_forward(xb, w1b, b1b, w2b, b2b))
    refb = _ref(*(a.astype(jnp.float32) for a in (xb, w1b, b1b, w2b, b2b)))
    assert outb.shape == (batch2, 3)
    assert jnp.allclose(outb.astype(jnp.float32), refb, atol=5e-2, rtol=5e-2)

    print("KERNEL_OK")
</pallas_src>

<mosaic_0001>
module attributes {stable_mosaic.version = 11 : i64} {
  func.func @mlp_kernel(%arg0: i32, %arg1: memref<4x128xf32, #tpu.memory_space<vmem>>, %arg2: memref<32x4xf32, #tpu.memory_space<vmem>>, %arg3: memref<32x1xf32, #tpu.memory_space<vmem>>, %arg4: memref<3x32xf32, #tpu.memory_space<vmem>>, %arg5: memref<3x1xf32, #tpu.memory_space<vmem>>, %arg6: memref<3x128xf32, #tpu.memory_space<vmem>>) attributes {dimension_semantics = [#tpu.dimension_semantics<parallel>], iteration_bounds = array<i64: 1>, scalar_prefetch = 0 : i64, scratch_operands = 0 : i64, tpu.core_type = #tpu.core_type<tc>, window_params = [{transform_indices = @transform_0, window_bounds = array<i64: 4, 128>}, {pipeline_mode = #tpu.pipeline_mode<synchronous>, transform_indices = @transform_1, window_bounds = array<i64: 32, 4>}, {pipeline_mode = #tpu.pipeline_mode<synchronous>, transform_indices = @transform_2, window_bounds = array<i64: 32, 1>}, {pipeline_mode = #tpu.pipeline_mode<synchronous>, transform_indices = @transform_3, window_bounds = array<i64: 3, 32>}, {pipeline_mode = #tpu.pipeline_mode<synchronous>, transform_indices = @transform_4, window_bounds = array<i64: 3, 1>}, {transform_indices = @transform_5, window_bounds = array<i64: 3, 128>}]} {
    %c0 = arith.constant 0 : index
    %c0_0 = arith.constant 0 : index
    %0 = vector.load %arg1[%c0, %c0_0] : memref<4x128xf32, #tpu.memory_space<vmem>>, vector<4x128xf32>
    %c0_1 = arith.constant 0 : index
    %c0_2 = arith.constant 0 : index
    %1 = vector.load %arg2[%c0_1, %c0_2] : memref<32x4xf32, #tpu.memory_space<vmem>>, vector<32x4xf32>
    %cst = arith.constant dense<0.000000e+00> : vector<32x128xf32>
    %2 = tpu.matmul %1, %0, %cst {dimension_numbers = #tpu.dot_dimension_numbers<[1], [0], [0], [1], [0, 0, 1, 1], [], []>} : vector<32x4xf32>, vector<4x128xf32>, vector<32x128xf32> -> vector<32x128xf32>
    %c0_3 = arith.constant 0 : index
    %c0_4 = arith.constant 0 : index
    %3 = vector.load %arg3[%c0_3, %c0_4] : memref<32x1xf32, #tpu.memory_space<vmem>>, vector<32x1xf32>
    %4 = vector.broadcast %3 : vector<32x1xf32> to vector<32x128xf32>
    %5 = arith.addf %2, %4 : vector<32x128xf32>
    %cst_5 = arith.constant 0.000000e+00 : f32
    %6 = vector.broadcast %cst_5 : f32 to vector<32x128xf32>
    %7 = arith.maximumf %5, %6 : vector<32x128xf32>
    %c0_6 = arith.constant 0 : index
    %c0_7 = arith.constant 0 : index
    %8 = vector.load %arg4[%c0_6, %c0_7] : memref<3x32xf32, #tpu.memory_space<vmem>>, vector<3x32xf32>
    %cst_8 = arith.constant dense<0.000000e+00> : vector<3x128xf32>
    %9 = tpu.matmul %8, %7, %cst_8 {dimension_numbers = #tpu.dot_dimension_numbers<[1], [0], [0], [1], [0, 0, 1, 1], [], []>} : vector<3x32xf32>, vector<32x128xf32>, vector<3x128xf32> -> vector<3x128xf32>
    %c0_9 = arith.constant 0 : index
    %c0_10 = arith.constant 0 : index
    %10 = vector.load %arg5[%c0_9, %c0_10] : memref<3x1xf32, #tpu.memory_space<vmem>>, vector<3x1xf32>
    %11 = vector.broadcast %10 : vector<3x1xf32> to vector<3x128xf32>
    %12 = arith.addf %9, %11 : vector<3x128xf32>
    %c0_11 = arith.constant 0 : index
    %c0_12 = arith.constant 0 : index
    %13 = vector.load %arg6[%c0_11, %c0_12] : memref<3x128xf32, #tpu.memory_space<vmem>>, vector<3x128xf32>
    tpu.vector_store %arg6[%c0_11, %c0_12], %12 {strides = array<i32>} : memref<3x128xf32, #tpu.memory_space<vmem>>, vector<3x128xf32>,
    return
  }
  func.func @transform_0(%arg0: i32) -> (i32, i32) {
    %c0_i32 = arith.constant 0 : i32
    %c0_i32_0 = arith.constant 0 : i32
    return %c0_i32, %arg0 : i32, i32
  }
  func.func @transform_1(%arg0: i32) -> (i32, i32) {
    %c0_i32 = arith.constant 0 : i32
    %c0_i32_0 = arith.constant 0 : i32
    %c0_i32_1 = arith.constant 0 : i32
    return %c0_i32, %c0_i32_0 : i32, i32
  }
  func.func @transform_2(%arg0: i32) -> (i32, i32) {
    %c0_i32 = arith.constant 0 : i32
    %c0_i32_0 = arith.constant 0 : i32
    %c0_i32_1 = arith.constant 0 : i32
    return %c0_i32, %c0_i32_0 : i32, i32
  }
  func.func @transform_3(%arg0: i32) -> (i32, i32) {
    %c0_i32 = arith.constant 0 : i32
    %c0_i32_0 = arith.constant 0 : i32
    %c0_i32_1 = arith.constant 0 : i32
    return %c0_i32, %c0_i32_0 : i32, i32
  }
  func.func @transform_4(%arg0: i32) -> (i32, i32) {
    %c0_i32 = arith.constant 0 : i32
    %c0_i32_0 = arith.constant 0 : i32
    %c0_i32_1 = arith.constant 0 : i32
    return %c0_i32, %c0_i32_0 : i32, i32
  }
  func.func @transform_5(%arg0: i32) -> (i32, i32) {
    %c0_i32 = arith.constant 0 : i32
    %c0_i32_0 = arith.constant 0 : i32
    return %c0_i32, %arg0 : i32, i32
  }
}

</mosaic_0001>

<llo_original>
// kernel: tpu_custom_call.1
$region0: #{tpu_custom_call.1}
  #allocation0 [shape = 'u32[]', space=smem, size = 0x4, offset = 0x4, fixed_abs, tag = 'smem constant byte address 0x4 - core index']
  #allocation1 [shape = 'u32[144,128]{1,0:T(1,128)}', space=vmem, size = 0x12000, scoped, tag = 'internal scratch']
  %s0 = inlined_call_operand.vmem [shape: f32[4,128], index: 0, kind: input, shape index: {}]
  %s1 = inlined_call_operand.vmem [shape: f32[32,4], index: 1, kind: input, shape index: {}]
  %s2 = inlined_call_operand.vmem [shape: f32[32,1], index: 2, kind: input, shape index: {}]
  %s3 = inlined_call_operand.vmem [shape: f32[3,32], index: 3, kind: input, shape index: {}]
  %s4 = inlined_call_operand.vmem [shape: f32[3,1], index: 4, kind: input, shape index: {}]
  %s5 = inlined_call_operand.hbm [shape: f32[3,128], index: 5, kind: output, shape index: {}]
  %s6 = sld [smem:[#allocation0]]
  $region30: #{tpu_custom_call.1} parent=0
    _
  %s8 = ssub.s32 1, %s6
  %s9 = scalar_select 0, %s8, %s6
  $region1: #{tpu_custom_call.1} parent=0
    #allocation2 [shape = 'u8[2048]{0}', space=vmem, size = 0x800, scoped, tag = 'output window, operand 0, single buffered']
    #allocation3 [shape = 's32[1]{0}', space=sflag, size = 0x4, scoped, tag = 'scoped memory for tpu_custom_call.1']
    %10 = vsyncpa [#allocation3], 0
    // Predicated region
    $region2: #{tpu_custom_call.1} parent=1 // pred_check
      _
    $region3: #{tpu_custom_call.1} parent=1 // pred_check_branch
      %12 = sbr.rel (0) target = $region5
    $region4: #{tpu_custom_call.1} parent=1 // pred_region
      _
    $region5: #{tpu_custom_call.1} parent=1 // pred_fallthru
      _
    // Predicated region
    $region6: #{tpu_custom_call.1} parent=1 // pred_check
      _
    $region7: #{tpu_custom_call.1} parent=1 // pred_check_branch
      %14 = sbr.rel (0) target = $region9
    $region8: #{tpu_custom_call.1} parent=1 // pred_region
      _
    $region9: #{tpu_custom_call.1} parent=1 // pred_fallthru
      _
    // Predicated region
    $region10: #{tpu_custom_call.1} parent=1 // pred_check
      _
    $region11: #{tpu_custom_call.1} parent=1 // pred_check_branch
      %16 = sbr.rel (0) target = $region13
    $region12: #{tpu_custom_call.1} parent=1 // pred_region
      _
    $region13: #{tpu_custom_call.1} parent=1 // pred_fallthru
      _
    // Predicated region
    $region14: #{tpu_custom_call.1} parent=1 // pred_check
      _
    $region15: #{tpu_custom_call.1} parent=1 // pred_check_branch
      %18 = sbr.rel (0) target = $region17
    $region16: #{tpu_custom_call.1} parent=1 // pred_region
      _
    $region17: #{tpu_custom_call.1} parent=1 // pred_fallthru
      _
    // Predicated region
    $region18: #{tpu_custom_call.1} parent=1 // pred_check
      _
    $region19: #{tpu_custom_call.1} parent=1 // pred_check_branch
      %20 = sbr.rel (0) target = $region21
    $region20: #{tpu_custom_call.1} parent=1 // pred_region
      _
    $region21: #{tpu_custom_call.1} parent=1 // pred_fallthru
      _
    %v21 = vld [vmem:[%s0] sm:$0xf]
    %v22 = vld [vmem:[%s1] sm:$0xff]
    %v23 = vld [vmem:[%s1 + $0x8] sm:$0xff]
    %v24 = vld [vmem:[%s1 + $0x10] sm:$0xff]
    %v25 = vld [vmem:[%s1 + $0x18] sm:$0xff]
    %v26 = vld [vmem:[%s2] sm:$0xff]
    %v27 = vld [vmem:[%s2 + $0x8] sm:$0xff]
    %v28 = vld [vmem:[%s2 + $0x10] sm:$0xff]
    %v29 = vld [vmem:[%s2 + $0x18] sm:$0xff]
    %31 = vset.pattern.permute.xlu0 0
    %32 = vperm.xlu0 %31, %v26
    %v33 = vpop.permute.xlu0 %32
    %36 = vset.pattern.permute.xlu0 0
    %37 = vperm.xlu0 %36, %v27
    %v38 = vpop.permute.xlu0 %37
    %41 = vset.pattern.permute.xlu0 0
    %42 = vperm.xlu0 %41, %v28
    %v43 = vpop.permute.xlu0 %42
    %46 = vset.pattern.permute.xlu0 0
    %47 = vperm.xlu0 %46, %v29
    %v48 = vpop.permute.xlu0 %47
    %vm50 = vcmask 31744
    %v52 = vsel %vm50, %v22, 0
    %v55 = vsel %vm50, %v23, 0
    %v58 = vsel %vm50, %v24, 0
    %v61 = vsel %vm50, %v25, 0
    %vm63 = vcmask 1043456
    %v65 = vsel %vm63, %v21, 0
    %67 = vmatprep.subr.mxu0 0.0
    %68 = vmatpush1.msra.mxu0 0.0
    %69 = vmatprep.subr.mxu0 0.0
    %70 = vmatpush1.msra.mxu0 0.0
    %71 = vmatprep.subr.mxu0 0.0
    %72 = vmatpush1.msra.mxu0 0.0
    %73 = vmatprep.subr.mxu0 0.0
    %74 = vmatpush1.msra.mxu0 0.0
    %75 = vmatprep.subr.mxu0 0.0
    %76 = vmatpush1.msra.mxu0 0.0
    %77 = vmatprep.subr.mxu0 0.0
    %78 = vmatpush1.msra.mxu0 0.0
    %79 = vmatprep.subr.mxu0 0.0
    %80 = vmatpush1.msra.mxu0 0.0
    %81 = vmatprep.subr.mxu0 0.0
    %82 = vmatpush1.msra.mxu0 0.0
    %83 = vmatprep.subr.mxu0 0.0
    %84 = vmatpush1.msra.mxu0 0.0
    %85 = vmatprep.subr.mxu0 0.0
    %86 = vmatpush1.msra.mxu0 0.0
    %87 = vmatprep.subr.mxu0 0.0
    %88 = vmatpush1.msra.mxu0 0.0
    %89 = vmatprep.subr.mxu0 0.0
    %90 = vmatpush1.msra.mxu0 0.0
    %91 = vmatprep.subr.mxu0 0.0
    %92 = vmatpush1.msra.mxu0 0.0
    %93 = vmatprep.subr.mxu0 0.0
    %94 = vmatpush1.msra.mxu0 0.0
    %95 = vmatprep.subr.mxu0 0.0
    %96 = vmatpush1.msra.mxu0 0.0
    %97 = vmatprep.subr.mxu0 0.0
    %98 = vmatpush1.msra.mxu0 %v65
    %99 = vmatprep.subr.mxu0 0.0
    %100 = vmatpush2.msra.mxu0 0.0
    %101 = vmatprep.subr.mxu0 0.0
    %102 = vmatpush2.msra.mxu0 0.0
    %103 = vmatprep.subr.mxu0 0.0
    %104 = vmatpush2.msra.mxu0 0.0
    %105 = vmatprep.subr.mxu0 0.0
    %106 = vmatpush2.msra.mxu0 0.0
    %107 = vmatprep.subr.mxu0 0.0
    %108 = vmatpush2.msra.mxu0 0.0
    %109 = vmatprep.subr.mxu0 0.0
    %110 = vmatpush2.msra.mxu0 0.0
    %111 = vmatprep.subr.mxu0 0.0
    %112 = vmatpush2.msra.mxu0 0.0
    %113 = vmatprep.subr.mxu0 0.0
    %114 = vmatpush2.msra.mxu0 0.0
    %115 = vmatprep.subr.mxu0 0.0
    %116 = vmatpush2.msra.mxu0 0.0
    %117 = vmatprep.subr.mxu0 0.0
    %118 = vmatpush2.msra.mxu0 0.0
    %119 = vmatprep.subr.mxu0 0.0
    %120 = vmatpush2.msra.mxu0 0.0
    %121 = vmatprep.subr.mxu0 0.0
    %122 = vmatpush2.msra.mxu0 0.0
    %123 = vmatprep.subr.mxu0 0.0
    %124 = vmatpush2.msra.mxu0 0.0
    %125 = vmatprep.subr.mxu0 0.0
    %126 = vmatpush2.msra.mxu0 0.0
    %127 = vmatprep.subr.mxu0 0.0
    %128 = vmatpush2.msra.mxu0 0.0
    %129 = vmatprep.subr.mxu0 0.0
    %130 = vmatpush2.msra.mxu0 0.0
    %131 = vmatprep.mubr.f32.mxu0 0.0
    %132 = vmatmul.mubr.f32.gmra.mxu0 %v52
    %v133 = vpop.f32.mrf.mxu0
    %v134 = vadd.f32 %v33, %v133
    %v135 = vpop.f32.mrf.mxu0
    %136 = vmatprep.mubr.f32.mxu0 0.0
    %137 = vmatmul.mubr.f32.gmra.mxu0 %v55
    %v138 = vpop.f32.mrf.mxu0
    %v139 = vadd.f32 %v38, %v138
    %v140 = vpop.f32.mrf.mxu0
    %141 = vmatprep.mubr.f32.mxu0 0.0
    %142 = vmatmul.mubr.f32.gmra.mxu0 %v58
    %v143 = vpop.f32.mrf.mxu0
    %v144 = vadd.f32 %v43, %v143
    %v145 = vpop.f32.mrf.mxu0
    %146 = vmatprep.mubr.f32.mxu0 0.0
    %147 = vmatmul.mubr.f32.gmra.mxu0 %v61
    %v148 = vpop.f32.mrf.mxu0
    %v149 = vadd.f32 %v48, %v148
    %v150 = vpop.f32.mrf.mxu0
    %151 = vdwg.mxu0
    %v152 = vmax.f32 %v134, 0.0
    %v153 = vmax.f32 %v139, 0.0
    %v154 = vmax.f32 %v144, 0.0
    %v155 = vmax.f32 %v149, 0.0
    %v156 = vld [vmem:[%s3] sm:$0x7]
    %v157 = vld [vmem:[%s4] sm:$0x7]
    %159 = vset.pattern.permute.xlu0 0
    %160 = vperm.xlu0 %159, %v157
    %v161 = vpop.permute.xlu0 %160
    %vm163 = vcmask 261120
    %v165 = vsel %vm163, %v156, 0
    %167 = vmatprep.subr.mxu0 0.0
    %168 = vmatpush1.msra.mxu0 0.0
    %169 = vmatprep.subr.mxu0 0.0
    %170 = vmatpush1.msra.mxu0 0.0
    %171 = vmatprep.subr.mxu0 0.0
    %172 = vmatpush1.msra.mxu0 0.0
    %173 = vmatprep.subr.mxu0 0.0
    %174 = vmatpush1.msra.mxu0 0.0
    %175 = vmatprep.subr.mxu0 0.0
    %176 = vmatpush1.msra.mxu0 0.0
    %177 = vmatprep.subr.mxu0 0.0
    %178 = vmatpush1.msra.mxu0 0.0
    %179 = vmatprep.subr.mxu0 0.0
    %180 = vmatpush1.msra.mxu0 0.0
    %181 = vmatprep.subr.mxu0 0.0
    %182 = vmatpush1.msra.mxu0 0.0
    %183 = vmatprep.subr.mxu0 0.0
    %184 = vmatpush1.msra.mxu0 0.0
    %185 = vmatprep.subr.mxu0 0.0
    %186 = vmatpush1.msra.mxu0 0.0
    %187 = vmatprep.subr.mxu0 0.0
    %188 = vmatpush1.msra.mxu0 0.0
    %189 = vmatprep.subr.mxu0 0.0
    %190 = vmatpush1.msra.mxu0 0.0
    %191 = vmatprep.subr.mxu0 0.0
    %192 = vmatpush1.msra.mxu0 %v155
    %193 = vmatprep.subr.mxu0 0.0
    %194 = vmatpush1.msra.mxu0 %v154
    %195 = vmatprep.subr.mxu0 0.0
    %196 = vmatpush1.msra.mxu0 %v153
    %197 = vmatprep.subr.mxu0 0.0
    %198 = vmatpush1.msra.mxu0 %v152
    %199 = vmatprep.subr.mxu0 0.0
    %200 = vmatpush2.msra.mxu0 0.0
    %201 = vmatprep.subr.mxu0 0.0
    %202 = vmatpush2.msra.mxu0 0.0
    %203 = vmatprep.subr.mxu0 0.0
    %204 = vmatpush2.msra.mxu0 0.0
    %205 = vmatprep.subr.mxu0 0.0
    %206 = vmatpush2.msra.mxu0 0.0
    %207 = vmatprep.subr.mxu0 0.0
    %208 = vmatpush2.msra.mxu0 0.0
    %209 = vmatprep.subr.mxu0 0.0
    %210 = vmatpush2.msra.mxu0 0.0
    %211 = vmatprep.subr.mxu0 0.0
    %212 = vmatpush2.msra.mxu0 0.0
    %213 = vmatprep.subr.mxu0 0.0
    %214 = vmatpush2.msra.mxu0 0.0
    %215 = vmatprep.subr.mxu0 0.0
    %216 = vmatpush2.msra.mxu0 0.0
    %217 = vmatprep.subr.mxu0 0.0
    %218 = vmatpush2.msra.mxu0 0.0
    %219 = vmatprep.subr.mxu0 0.0
    %220 = vmatpush2.msra.mxu0 0.0
    %221 = vmatprep.subr.mxu0 0.0
    %222 = vmatpush2.msra.mxu0 0.0
    %223 = vmatprep.subr.mxu0 0.0
    %224 = vmatpush2.msra.mxu0 0.0
    %225 = vmatprep.subr.mxu0 0.0
    %226 = vmatpush2.msra.mxu0 0.0
    %227 = vmatprep.subr.mxu0 0.0
    %228 = vmatpush2.msra.mxu0 0.0
    %229 = vmatprep.subr.mxu0 0.0
    %230 = vmatpush2.msra.mxu0 0.0
    %231 = vmatprep.mubr.f32.mxu0 0.0
    %232 = vmatmul.mubr.f32.gmra.mxu0 %v165
    %v233 = vpop.f32.mrf.mxu0
    %v234 = vadd.f32 %v161, %v233
    %v235 = vpop.f32.mrf.mxu0
    %236 = vdwg.mxu0
    %237 = vst [vmem:[#allocation2] sm:$0x7] %v234
    // Predicated region
    $region22: #{tpu_custom_call.1} parent=1 // pred_check
      _
    $region23: #{tpu_custom_call.1} parent=1 // pred_check_branch
      %239 = sbr.rel (0) target = $region25
    $region24: #{tpu_custom_call.1} parent=1 // pred_region
      %s241 = ssub.s32 64, 64
      %242 = vsyncadd [#allocation3], %s241
      %s244 = sshll.u32 [#allocation2], 4
      %s245 = int_to_ptr.vmem [resolvable:$true] %s244
      %247 = dma.vmem_to_hbm [thread:$0]  %s245, 64, %s5, [#allocation3]
    $region25: #{tpu_custom_call.1} parent=1 // pred_fallthru
      _
    // Predicated region
    $region26: #{tpu_custom_call.1} parent=1 // pred_check
      _
    $region27: #{tpu_custom_call.1} parent=1 // pred_check_branch
      %249 = sbr.rel (0) target = $region29
    $region28: #{tpu_custom_call.1} parent=1 // pred_region
      %250 = dma.done [#allocation3], 64
    $region29: #{tpu_custom_call.1} parent=1 // pred_fallthru
      _
    %251 = vsyncpa [#allocation3], 1

</llo_original>
